<compile_context>
chip_gen: v5e
topology: v5e:2x2
jax: 0.10.0
libtpu: 0.0.40
codegen_flags: <defaults>
</compile_context>

<pallas_src>
import jax
import jax.numpy as jnp
from jax.experimental import pallas as pl
from jax.experimental.pallas import tpu as pltpu


def _round_up(x, m):
    return ((x + m - 1) // m) * m


def parser_probe_kernel(x_ref, proj_ref, v_ref, o_ref, t_ref):
    # x_ref:    (tm, H)     tile of flattened word representations
    # proj_ref: (H, R)      shared projection (grid-invariant)
    # v_ref:    (R, Npad)   fused [vd | vc | vu] head weights, lane-padded
    # o_ref:    (tm, Npad)  fused lane-dense output tile
    # t_ref:    (tm, R)     VMEM scratch for the projected representations
    t_ref[...] = jnp.dot(x_ref[...], proj_ref[...],
                         preferred_element_type=jnp.float32)
    o_ref[...] = jnp.dot(t_ref[...], v_ref[...],
                         preferred_element_type=jnp.float32).astype(o_ref.dtype)


def parser_probe_forward(batch, proj, vectors_d, vectors_c, vectors_u,
                         *, tm=256, compute_dtype=None):
    """batch: (B, S, H). Returns (ds (B,S), cs (B,S,C), us (B,S,U)) in f32."""
    B, S, H = batch.shape
    R = proj.shape[1]
    C = vectors_c.shape[1]
    U = vectors_u.shape[1]

    # ---- fuse the three heads into one lane-dense weight matrix -------------
    N = 1 + C + U
    Npad = _round_up(N, 128)
    v_cat = jnp.concatenate(
        [vectors_d.reshape(R, 1), vectors_c, vectors_u], axis=1)
    v_cat = jnp.pad(v_cat, ((0, 0), (0, Npad - N)))

    # ---- flatten and pad rows to a multiple of the row tile -----------------
    M = B * S
    tm_eff = min(tm, _round_up(M, 8))          # keep sublane-aligned tiles
    Mpad = _round_up(M, tm_eff)
    x2d = batch.reshape(M, H)
    if Mpad != M:
        x2d = jnp.pad(x2d, ((0, Mpad - M), (0, 0)))

    # ---- optional bf16 input cast (f32 accumulation inside the kernel) ------
    if compute_dtype is not None:
        x2d = x2d.astype(compute_dtype)
        proj = proj.astype(compute_dtype)
        v_cat = v_cat.astype(compute_dtype)

    itemsize = jnp.dtype(x2d.dtype).itemsize
    cost = pl.CostEstimate(
        flops=2 * Mpad * H * R + 2 * Mpad * R * Npad,
        transcendentals=0,
        bytes_accessed=(Mpad * H + H * R + R * Npad) * itemsize
                       + Mpad * Npad * 4,
    )

    grid = (Mpad // tm_eff,)

    out2d = pl.pallas_call(
        parser_probe_kernel,
        out_shape=jax.ShapeDtypeStruct((Mpad, Npad), jnp.float32),
        grid_spec=pltpu.PrefetchScalarGridSpec(
            num_scalar_prefetch=0,
            grid=grid,
            in_specs=[
                pl.BlockSpec((tm_eff, H), lambda i: (i, 0)),   # x row tile
                pl.BlockSpec((H, R), lambda i: (0, 0)),        # proj (resident)
                pl.BlockSpec((R, Npad), lambda i: (0, 0)),     # fused heads
            ],
            out_specs=pl.BlockSpec((tm_eff, Npad), lambda i: (i, 0)),
            scratch_shapes=[pltpu.VMEM((tm_eff, R), jnp.float32)],
        ),
        compiler_params=pltpu.CompilerParams(
            dimension_semantics=("parallel",)),
        cost_estimate=cost,
    )(x2d, proj, v_cat)

    out2d = out2d[:M]                               # drop padded rows
    ds_pred = out2d[:, 0].reshape(B, S)
    cs_pred = out2d[:, 1:1 + C].reshape(B, S, C)
    us_pred = out2d[:, 1 + C:1 + C + U].reshape(B, S, U)
    return ds_pred, cs_pred, us_pred


def init_parser_probe_params(key, probe_rank, hidden_dim,
                             number_labels_d, number_labels_c, number_labels_u):
    """Deterministic equivalent of the nn.init.uniform_(-0.05, 0.05) inits."""
    k1, k2, k3, k4 = jax.random.split(key, 4)
    proj = jax.random.uniform(k1, (hidden_dim, probe_rank),
                              minval=-0.05, maxval=0.05, dtype=jnp.float32)
    vectors_d = jax.random.uniform(k2, (probe_rank,),
                                   minval=-0.05, maxval=0.05, dtype=jnp.float32)
    vectors_c = jax.random.uniform(k3, (probe_rank, number_labels_c),
                                   minval=-0.05, maxval=0.05, dtype=jnp.float32)
    vectors_u = jax.random.uniform(k4, (probe_rank, number_labels_u),
                                   minval=-0.05, maxval=0.05, dtype=jnp.float32)
    # number_labels_d is stored but unused in forward (vectors_d is rank-1),
    # matching the PyTorch module.
    return proj, vectors_d, vectors_c, vectors_u


if __name__ == "__main__":
    # Small shapes consistent with the forward: batch of word representations.
    B, S, H = 2, 8, 32          # batch_size, max_seq_len, hidden_dim
    R = 16                      # probe_rank
    num_d, num_c, num_u = 4, 8, 8

    key = jax.random.PRNGKey(0)
    kx, kp = jax.random.split(key)
    batch = jax.random.normal(kx, (B, S, H), dtype=jnp.float32)
    proj, vectors_d, vectors_c, vectors_u = init_parser_probe_params(
        kp, R, H, num_d, num_c, num_u)

    ds_pred, cs_pred, us_pred = parser_probe_forward(
        batch, proj, vectors_d, vectors_c, vectors_u)
    jax.block_until_ready((ds_pred, cs_pred, us_pred))

    # Reference (pure JAX) check.
    transformed = jnp.matmul(batch, proj)
    ds_ref = jnp.matmul(transformed, vectors_d)
    cs_ref = jnp.matmul(transformed, vectors_c)
    us_ref = jnp.matmul(transformed, vectors_u)

    assert ds_pred.shape == (B, S)
    assert cs_pred.shape == (B, S, num_c)
    assert us_pred.shape == (B, S, num_u)
    assert jnp.allclose(ds_pred, ds_ref, atol=1e-5)
    assert jnp.allclose(cs_pred, cs_ref, atol=1e-5)
    assert jnp.allclose(us_pred, us_ref, atol=1e-5)

    print("KERNEL_OK")
</pallas_src>

<mosaic_0001>
module attributes {stable_mosaic.version = 11 : i64} {
  func.func @parser_probe_kernel(%arg0: i32, %arg1: memref<16x32xf32, #tpu.memory_space<vmem>>, %arg2: memref<32x16xf32, #tpu.memory_space<vmem>>, %arg3: memref<16x128xf32, #tpu.memory_space<vmem>>, %arg4: memref<16x128xf32, #tpu.memory_space<vmem>>, %arg5: memref<16x16xf32, #tpu.memory_space<vmem>>) attributes {dimension_semantics = [#tpu.dimension_semantics<parallel>], iteration_bounds = array<i64: 1>, scalar_prefetch = 0 : i64, scratch_operands = 1 : i64, tpu.core_type = #tpu.core_type<tc>, window_params = [{transform_indices = @transform_0, window_bounds = array<i64: 16, 32>}, {pipeline_mode = #tpu.pipeline_mode<synchronous>, transform_indices = @transform_1, window_bounds = array<i64: 32, 16>}, {pipeline_mode = #tpu.pipeline_mode<synchronous>, transform_indices = @transform_2, window_bounds = array<i64: 16, 128>}, {transform_indices = @transform_3, window_bounds = array<i64: 16, 128>}]} {
    %c0 = arith.constant 0 : index
    %c0_0 = arith.constant 0 : index
    %0 = vector.load %arg1[%c0, %c0_0] : memref<16x32xf32, #tpu.memory_space<vmem>>, vector<16x32xf32>
    %c0_1 = arith.constant 0 : index
    %c0_2 = arith.constant 0 : index
    %1 = vector.load %arg2[%c0_1, %c0_2] : memref<32x16xf32, #tpu.memory_space<vmem>>, vector<32x16xf32>
    %cst = arith.constant dense<0.000000e+00> : vector<16x16xf32>
    %2 = tpu.matmul %0, %1, %cst {dimension_numbers = #tpu.dot_dimension_numbers<[1], [0], [0], [1], [0, 0, 1, 1], [], []>} : vector<16x32xf32>, vector<32x16xf32>, vector<16x16xf32> -> vector<16x16xf32>
    %c0_3 = arith.constant 0 : index
    %c0_4 = arith.constant 0 : index
    %3 = vector.load %arg5[%c0_3, %c0_4] : memref<16x16xf32, #tpu.memory_space<vmem>>, vector<16x16xf32>
    tpu.vector_store %arg5[%c0_3, %c0_4], %2 {strides = array<i32>} : memref<16x16xf32, #tpu.memory_space<vmem>>, vector<16x16xf32>,
    %c0_5 = arith.constant 0 : index
    %c0_6 = arith.constant 0 : index
    %4 = vector.load %arg5[%c0_5, %c0_6] : memref<16x16xf32, #tpu.memory_space<vmem>>, vector<16x16xf32>
    %c0_7 = arith.constant 0 : index
    %c0_8 = arith.constant 0 : index
    %5 = vector.load %arg3[%c0_7, %c0_8] : memref<16x128xf32, #tpu.memory_space<vmem>>, vector<16x128xf32>
    %cst_9 = arith.constant dense<0.000000e+00> : vector<16x128xf32>
    %6 = tpu.matmul %4, %5, %cst_9 {dimension_numbers = #tpu.dot_dimension_numbers<[1], [0], [0], [1], [0, 0, 1, 1], [], []>} : vector<16x16xf32>, vector<16x128xf32>, vector<16x128xf32> -> vector<16x128xf32>
    %c0_10 = arith.constant 0 : index
    %c0_11 = arith.constant 0 : index
    %7 = vector.load %arg4[%c0_10, %c0_11] : memref<16x128xf32, #tpu.memory_space<vmem>>, vector<16x128xf32>
    tpu.vector_store %arg4[%c0_10, %c0_11], %6 {strides = array<i32>} : memref<16x128xf32, #tpu.memory_space<vmem>>, vector<16x128xf32>,
    return
  }
  func.func @transform_0(%arg0: i32) -> (i32, i32) {
    %c0_i32 = arith.constant 0 : i32
    %c0_i32_0 = arith.constant 0 : i32
    return %arg0, %c0_i32 : i32, i32
  }
  func.func @transform_1(%arg0: i32) -> (i32, i32) {
    %c0_i32 = arith.constant 0 : i32
    %c0_i32_0 = arith.constant 0 : i32
    %c0_i32_1 = arith.constant 0 : i32
    return %c0_i32, %c0_i32_0 : i32, i32
  }
  func.func @transform_2(%arg0: i32) -> (i32, i32) {
    %c0_i32 = arith.constant 0 : i32
    %c0_i32_0 = arith.constant 0 : i32
    %c0_i32_1 = arith.constant 0 : i32
    return %c0_i32, %c0_i32_0 : i32, i32
  }
  func.func @transform_3(%arg0: i32) -> (i32, i32) {
    %c0_i32 = arith.constant 0 : i32
    %c0_i32_0 = arith.constant 0 : i32
    return %arg0, %c0_i32 : i32, i32
  }
}

</mosaic_0001>

<llo_original>
// kernel: tpu_custom_call.1
$region0: #{tpu_custom_call.1}
  #allocation0 [shape = 'u32[]', space=smem, size = 0x4, offset = 0x4, fixed_abs, tag = 'smem constant byte address 0x4 - core index']
  #allocation1 [shape = 'u32[72,128]{1,0:T(1,128)}', space=vmem, size = 0x9000, scoped, tag = 'internal scratch']
  #allocation2 [shape = 'f32[16,16]{1,0:T(8,128)}', space=vmem, size = 0x2000, scoped, tag = 'scratch operand']
  %s0 = inlined_call_operand.vmem [shape: f32[16,32], index: 0, kind: input, shape index: {}]
  %s1 = inlined_call_operand.vmem [shape: f32[32,16], index: 1, kind: input, shape index: {}]
  %s2 = inlined_call_operand.vmem [shape: f32[16,128], index: 2, kind: input, shape index: {}]
  %s3 = inlined_call_operand.hbm [shape: f32[16,128], index: 3, kind: output, shape index: {}]
  %s4 = sld [smem:[#allocation0]]
  $region22: #{tpu_custom_call.1} parent=0
    _
  %s6 = ssub.s32 1, %s4
  %s7 = scalar_select 0, %s6, %s4
  $region1: #{tpu_custom_call.1} parent=0
    #allocation3 [shape = 'u8[8192]{0}', space=vmem, size = 0x2000, scoped, tag = 'output window, operand 0, single buffered']
    #allocation4 [shape = 's32[1]{0}', space=sflag, size = 0x4, scoped, tag = 'scoped memory for tpu_custom_call.1']
    %8 = vsyncpa [#allocation4], 0
    // Predicated region
    $region2: #{tpu_custom_call.1} parent=1 // pred_check
      _
    $region3: #{tpu_custom_call.1} parent=1 // pred_check_branch
      %10 = sbr.rel (0) target = $region5
    $region4: #{tpu_custom_call.1} parent=1 // pred_region
      _
    $region5: #{tpu_custom_call.1} parent=1 // pred_fallthru
      _
    // Predicated region
    $region6: #{tpu_custom_call.1} parent=1 // pred_check
      _
    $region7: #{tpu_custom_call.1} parent=1 // pred_check_branch
      %12 = sbr.rel (0) target = $region9
    $region8: #{tpu_custom_call.1} parent=1 // pred_region
      _
    $region9: #{tpu_custom_call.1} parent=1 // pred_fallthru
      _
    // Predicated region
    $region10: #{tpu_custom_call.1} parent=1 // pred_check
      _
    $region11: #{tpu_custom_call.1} parent=1 // pred_check_branch
      %14 = sbr.rel (0) target = $region13
    $region12: #{tpu_custom_call.1} parent=1 // pred_region
      _
    $region13: #{tpu_custom_call.1} parent=1 // pred_fallthru
      _
    %v15 = vld [vmem:[%s0] sm:$0xff]
    %v16 = vld [vmem:[%s0 + $0x8] sm:$0xff]
    %v17 = vld [vmem:[%s1] sm:$0xff]
    %v18 = vld [vmem:[%s1 + $0x8] sm:$0xff]
    %v19 = vld [vmem:[%s1 + $0x10] sm:$0xff]
    %v20 = vld [vmem:[%s1 + $0x18] sm:$0xff]
    %vm21 = vcmask 261120
    %v23 = vsel %vm21, %v15, 0
    %v26 = vsel %vm21, %v16, 0
    %28 = vmatpush.msra.mxu0 0.0
    %29 = vmatpush.msra.mxu0 0.0
    %30 = vmatpush.msra.mxu0 0.0
    %31 = vmatpush.msra.mxu0 0.0
    %32 = vmatpush.msra.mxu0 0.0
    %33 = vmatpush.msra.mxu0 0.0
    %34 = vmatpush.msra.mxu0 0.0
    %35 = vmatpush.msra.mxu0 0.0
    %36 = vmatpush.msra.mxu0 0.0
    %37 = vmatpush.msra.mxu0 0.0
    %38 = vmatpush.msra.mxu0 0.0
    %39 = vmatpush.msra.mxu0 0.0
    %40 = vmatpush.msra.mxu0 %v20
    %41 = vmatpush.msra.mxu0 %v19
    %42 = vmatpush.msra.mxu0 %v18
    %43 = vmatpush.msra.mxu0 %v17
    %44 = vmatmul.f32.gmra.mxu0 %v23
    %v45 = vpop.f32.mrf.mxu0
    %v46 = vadd.f32 0.0, %v45
    %47 = vmatmul.f32.gmra.mxu0 %v26
    %v48 = vpop.f32.mrf.mxu0
    %v49 = vadd.f32 0.0, %v48
    %50 = vdwg.mxu0
    %vm51 = vcmask 130048
    %52 = vst.msk [vmem:[#allocation2] sm:$0xff] %vm51, %v46
    %53 = vst.msk [vmem:[#allocation2 + $0x8] sm:$0xff] %vm51, %v49
    %v54 = vld [vmem:[#allocation2] sm:$0xff]
    %v55 = vld [vmem:[#allocation2 + $0x8] sm:$0xff]
    %v56 = vld [vmem:[%s2] sm:$0xff]
    %v57 = vld [vmem:[%s2 + $0x8] sm:$0xff]
    %v59 = vsel %vm51, %v54, 0
    %v62 = vsel %vm51, %v55, 0
    %64 = vmatpush.msra.mxu0 0.0
    %65 = vmatpush.msra.mxu0 0.0
    %66 = vmatpush.msra.mxu0 0.0
    %67 = vmatpush.msra.mxu0 0.0
    %68 = vmatpush.msra.mxu0 0.0
    %69 = vmatpush.msra.mxu0 0.0
    %70 = vmatpush.msra.mxu0 0.0
    %71 = vmatpush.msra.mxu0 0.0
    %72 = vmatpush.msra.mxu0 0.0
    %73 = vmatpush.msra.mxu0 0.0
    %74 = vmatpush.msra.mxu0 0.0
    %75 = vmatpush.msra.mxu0 0.0
    %76 = vmatpush.msra.mxu0 0.0
    %77 = vmatpush.msra.mxu0 0.0
    %78 = vmatpush.msra.mxu0 %v57
    %79 = vmatpush.msra.mxu0 %v56
    %80 = vmatmul.f32.gmra.mxu0 %v59
    %v81 = vpop.f32.mrf.mxu0
    %v82 = vadd.f32 0.0, %v81
    %83 = vmatmul.f32.gmra.mxu0 %v62
    %v84 = vpop.f32.mrf.mxu0
    %v85 = vadd.f32 0.0, %v84
    %86 = vdwg.mxu0
    %87 = vst [vmem:[#allocation3] sm:$0xff] %v82
    %88 = vst [vmem:[#allocation3 + $0x8] sm:$0xff] %v85
    // Predicated region
    $region14: #{tpu_custom_call.1} parent=1 // pred_check
      _
    $region15: #{tpu_custom_call.1} parent=1 // pred_check_branch
      %90 = sbr.rel (0) target = $region17
    $region16: #{tpu_custom_call.1} parent=1 // pred_region
      %92 = vsyncadd [#allocation4], 0
      %s93 = sshll.u32 [#allocation3], 4
      %s94 = int_to_ptr.vmem [resolvable:$true] %s93
      %s95 = sshll.u32 %s3, 4
      %s96 = int_to_ptr.hbm [resolvable:$true] %s95
      %101 = dma.vmem_to_hbm [thread:$0]  %s94, 256, %s96, [#allocation4], 128, 128, 8
    $region17: #{tpu_custom_call.1} parent=1 // pred_fallthru
      _
    // Predicated region
    $region18: #{tpu_custom_call.1} parent=1 // pred_check
      _
    $region19: #{tpu_custom_call.1} parent=1 // pred_check_branch
      %103 = sbr.rel (0) target = $region21
    $region20: #{tpu_custom_call.1} parent=1 // pred_region
      %105 = dma.done [#allocation4], 256
    $region21: #{tpu_custom_call.1} parent=1 // pred_fallthru
      _
    %106 = vsyncpa [#allocation4], 1

</llo_original>
